<compile_context>
chip_gen: v6e
topology: v6e:2x2x1
jax: 0.10.0
libtpu: 0.0.40
codegen_flags: <defaults>
</compile_context>

<pallas_src>
import jax
import jax.numpy as jnp
from jax.experimental import pallas as pl
from jax.experimental.pallas import tpu as pltpu

LANE = 128
SUBLANE = 8
MAX_BATCH_TILE = 1024


def _round_up(x, m):
    return ((x + m - 1) // m) * m


def _cdiv(a, b):
    return (a + b - 1) // b


def _pad2d(a, rows, cols):
    r, c = a.shape
    return jnp.pad(a, ((0, rows - r), (0, cols - c)))


# ----------------------------------------------------------------------------
# Parameter init (PyTorch nn.Linear-style) and lane padding
# ----------------------------------------------------------------------------
def init_critic_params(key, state_size, action_size, hidden_sizes):
    """Uniform +/- 1/sqrt(fan_in) init. Weights stored (in_features, out_features)."""
    dims = [state_size + action_size] + list(hidden_sizes) + [1]
    params = []
    for din, dout in zip(dims[:-1], dims[1:]):
        key, kw, kb = jax.random.split(key, 3)
        bound = 1.0 / jnp.sqrt(jnp.float32(din))
        w = jax.random.uniform(kw, (din, dout), jnp.float32, -bound, bound)
        b = jax.random.uniform(kb, (dout,), jnp.float32, -bound, bound)
        params.append((w, b))
    return params


def pad_critic_params(params, *, compute_dtype=jnp.bfloat16):
    """Zero-pad weight output lanes (and hidden input rows) to 128 multiples.

    Layer 0 keeps its tiny true input dim (state+action): only the weights need
    lane padding. Weights are cast to `compute_dtype` (bf16 by default, MXU
    native on v6e/v7x); biases stay f32 because bias-add/ReLU run in f32 on the
    VPU. Zero padding keeps the math exact: padded hidden lanes stay exactly
    zero through bias + ReLU, so the real output lane is untouched.
    """
    padded = []
    for li, (w, b) in enumerate(params):
        din, dout = w.shape
        din_p = din if li == 0 else _round_up(din, LANE)
        dout_p = _round_up(dout, LANE)
        padded.append(_pad2d(w, din_p, dout_p).astype(compute_dtype))
        padded.append(_pad2d(b.reshape(1, -1), 1, dout_p).astype(jnp.float32))
    return padded


# ----------------------------------------------------------------------------
# Fused kernel
# ----------------------------------------------------------------------------
def _make_fused_critic_kernel(n_layers):
    """n_layers = number of Linear layers (hidden layers + final)."""

    def kernel(x_ref, *refs):
        out_ref = refs[-1]
        p = refs[:-1]

        x = x_ref[...]  # (bt, Din) bf16
        for li in range(n_layers):
            w = p[2 * li][...]
            b = p[2 * li + 1][...]
            # bf16 operands on the MXU, f32 accumulation; bias/ReLU in f32.
            y = jnp.dot(x.astype(w.dtype), w,
                        preferred_element_type=jnp.float32) + b
            x = jnp.maximum(y, 0.0) if li < n_layers - 1 else y

        # Only the first output lane is real; write the narrow Q column.
        out_ref[...] = x[:, : out_ref.shape[-1]].astype(out_ref.dtype)

    return kernel


def _choose_batch_tiling(batch, *, max_tile=MAX_BATCH_TILE, target_steps=2):
    """Adaptive tile: waste <= a few rows, >= 2 grid steps for v7x megacore."""
    steps = _cdiv(batch, max_tile)
    if steps < target_steps and batch >= target_steps * SUBLANE:
        steps = target_steps
    bt = _round_up(_cdiv(batch, steps), SUBLANE)
    return bt, bt * steps, steps


def critic_forward(padded_params, state, action, *, compute_dtype=jnp.bfloat16):
    """Fused forward: q = MLP(concat(state, action)). Returns (B, 1) f32."""
    B = state.shape[0]
    din = state.shape[1] + action.shape[1]
    assert padded_params[0].shape[0] == din
    n_layers = len(padded_params) // 2

    bt, b_pad, steps = _choose_batch_tiling(B)

    # One tiny concat (~Din * 2 B/row); NO lane padding of activations.
    x = jnp.concatenate([state, action], axis=1).astype(compute_dtype)
    if b_pad != B:
        x = jnp.pad(x, ((0, b_pad - B), (0, 0)))

    # Batch-tiled input / output; weights & biases VMEM-resident across grid.
    in_specs = [pl.BlockSpec((bt, din), lambda i: (i, 0))]
    for prm in padded_params:
        r, c = prm.shape
        in_specs.append(pl.BlockSpec((r, c), lambda i: (0, 0)))
    out_spec = pl.BlockSpec((bt, 1), lambda i: (i, 0))

    # Advisory cost hint so XLA schedules this tiny, latency-bound call tightly.
    weights = padded_params[0::2]
    flops = sum(2 * b_pad * w.shape[0] * w.shape[1] for w in weights)
    bytes_accessed = (
        x.size * x.dtype.itemsize
        + sum(p.size * p.dtype.itemsize for p in padded_params)
        + b_pad * 4
    )

    out = pl.pallas_call(
        _make_fused_critic_kernel(n_layers),
        out_shape=jax.ShapeDtypeStruct((b_pad, 1), jnp.float32),
        grid_spec=pltpu.PrefetchScalarGridSpec(
            num_scalar_prefetch=0,
            grid=(steps,),
            in_specs=in_specs,
            out_specs=out_spec,
        ),
        compiler_params=pltpu.CompilerParams(dimension_semantics=("parallel",)),
        cost_estimate=pl.CostEstimate(
            flops=flops, transcendentals=0, bytes_accessed=bytes_accessed
        ),
    )(x, *padded_params)

    return out[:B]


# ----------------------------------------------------------------------------
# References
# ----------------------------------------------------------------------------
def critic_forward_ref(params, state, action):
    """Pure-f32 reference (PyTorch semantics)."""
    x = jnp.concatenate([state, action], axis=1)
    for w, b in params[:-1]:
        x = jnp.maximum(x @ w + b, 0.0)
    w, b = params[-1]
    return x @ w + b


def critic_forward_ref_cast(params, state, action, compute_dtype=jnp.bfloat16):
    """Reference mimicking the kernel's bf16-operand / f32-accumulate casts."""
    x = jnp.concatenate([state, action], axis=1).astype(compute_dtype)
    n = len(params)
    for li, (w, b) in enumerate(params):
        y = jnp.dot(x.astype(compute_dtype), w.astype(compute_dtype),
                    preferred_element_type=jnp.float32) + b.astype(jnp.float32)
        x = jnp.maximum(y, 0.0) if li < n - 1 else y
    return x


if __name__ == "__main__":
    state_size = 8
    action_size = 4
    hidden_sizes = [32, 32]
    batch = 2

    key = jax.random.PRNGKey(0)
    kp, ks, ka = jax.random.split(key, 3)

    params = init_critic_params(kp, state_size, action_size, hidden_sizes)
    padded = pad_critic_params(params)

    state = jax.random.normal(ks, (batch, state_size), jnp.float32)
    action = jax.random.normal(ka, (batch, action_size), jnp.float32)

    q = critic_forward(padded, state, action)
    jax.block_until_ready(q)
    assert q.shape == (batch, 1)
    # Tight check vs a reference with the same bf16 operand rounding.
    q_cast = critic_forward_ref_cast(params, state, action)
    assert jnp.allclose(q, q_cast, atol=1e-2, rtol=1e-2)
    # Loose sanity check vs the exact f32 PyTorch-equivalent semantics.
    q_f32 = critic_forward_ref(params, state, action)
    assert jnp.allclose(q, q_f32, atol=5e-2, rtol=5e-2)

    # Ragged batch -> adaptive tiling (2 grid steps of 152 rows, 4 pad rows).
    kb1, kb2 = jax.random.split(jax.random.PRNGKey(1))
    big_state = jax.random.normal(kb1, (300, state_size), jnp.float32)
    big_action = jax.random.normal(kb2, (300, action_size), jnp.float32)
    q_big = critic_forward(padded, big_state, big_action)
    jax.block_until_ready(q_big)
    assert q_big.shape == (300, 1)
    q_big_cast = critic_forward_ref_cast(params, big_state, big_action)
    assert jnp.allclose(q_big, q_big_cast, atol=1e-2, rtol=1e-2)

    print("KERNEL_OK")
</pallas_src>

<mosaic_0001>
module attributes {stable_mosaic.version = 11 : i64} {
  func.func @kernel(%arg0: i32, %arg1: memref<8x12xbf16, #tpu.memory_space<vmem>>, %arg2: memref<12x128xbf16, #tpu.memory_space<vmem>>, %arg3: memref<1x128xf32, #tpu.memory_space<vmem>>, %arg4: memref<128x128xbf16, #tpu.memory_space<vmem>>, %arg5: memref<1x128xf32, #tpu.memory_space<vmem>>, %arg6: memref<128x128xbf16, #tpu.memory_space<vmem>>, %arg7: memref<1x128xf32, #tpu.memory_space<vmem>>, %arg8: memref<8x1xf32, #tpu.memory_space<vmem>>) attributes {dimension_semantics = [#tpu.dimension_semantics<parallel>], iteration_bounds = array<i64: 1>, scalar_prefetch = 0 : i64, scratch_operands = 0 : i64, tpu.core_type = #tpu.core_type<tc>, window_params = [{transform_indices = @transform_0, window_bounds = array<i64: 8, 12>}, {pipeline_mode = #tpu.pipeline_mode<synchronous>, transform_indices = @transform_1, window_bounds = array<i64: 12, 128>}, {pipeline_mode = #tpu.pipeline_mode<synchronous>, transform_indices = @transform_2, window_bounds = array<i64: 1, 128>}, {pipeline_mode = #tpu.pipeline_mode<synchronous>, transform_indices = @transform_3, window_bounds = array<i64: 128, 128>}, {pipeline_mode = #tpu.pipeline_mode<synchronous>, transform_indices = @transform_4, window_bounds = array<i64: 1, 128>}, {pipeline_mode = #tpu.pipeline_mode<synchronous>, transform_indices = @transform_5, window_bounds = array<i64: 128, 128>}, {pipeline_mode = #tpu.pipeline_mode<synchronous>, transform_indices = @transform_6, window_bounds = array<i64: 1, 128>}, {transform_indices = @transform_7, window_bounds = array<i64: 8, 1>}]} {
    %c0 = arith.constant 0 : index
    %c0_0 = arith.constant 0 : index
    %0 = vector.load %arg1[%c0, %c0_0] : memref<8x12xbf16, #tpu.memory_space<vmem>>, vector<8x12xbf16>
    %c0_1 = arith.constant 0 : index
    %c0_2 = arith.constant 0 : index
    %1 = vector.load %arg2[%c0_1, %c0_2] : memref<12x128xbf16, #tpu.memory_space<vmem>>, vector<12x128xbf16>
    %c0_3 = arith.constant 0 : index
    %c0_4 = arith.constant 0 : index
    %2 = vector.load %arg3[%c0_3, %c0_4] : memref<1x128xf32, #tpu.memory_space<vmem>>, vector<1x128xf32>
    %cst = arith.constant dense<0.000000e+00> : vector<8x128xf32>
    %3 = tpu.matmul %0, %1, %cst {dimension_numbers = #tpu.dot_dimension_numbers<[1], [0], [0], [1], [0, 0, 1, 1], [], []>} : vector<8x12xbf16>, vector<12x128xbf16>, vector<8x128xf32> -> vector<8x128xf32>
    %4 = vector.broadcast %2 : vector<1x128xf32> to vector<8x128xf32>
    %5 = arith.addf %3, %4 : vector<8x128xf32>
    %cst_5 = arith.constant 0.000000e+00 : f32
    %6 = vector.broadcast %cst_5 : f32 to vector<8x128xf32>
    %7 = arith.maximumf %5, %6 : vector<8x128xf32>
    %c0_6 = arith.constant 0 : index
    %c0_7 = arith.constant 0 : index
    %8 = vector.load %arg4[%c0_6, %c0_7] : memref<128x128xbf16, #tpu.memory_space<vmem>>, vector<128x128xbf16>
    %c0_8 = arith.constant 0 : index
    %c0_9 = arith.constant 0 : index
    %9 = vector.load %arg5[%c0_8, %c0_9] : memref<1x128xf32, #tpu.memory_space<vmem>>, vector<1x128xf32>
    %10 = arith.truncf %7 : vector<8x128xf32> to vector<8x128xbf16>
    %cst_10 = arith.constant dense<0.000000e+00> : vector<8x128xf32>
    %11 = tpu.matmul %10, %8, %cst_10 {dimension_numbers = #tpu.dot_dimension_numbers<[1], [0], [0], [1], [0, 0, 1, 1], [], []>} : vector<8x128xbf16>, vector<128x128xbf16>, vector<8x128xf32> -> vector<8x128xf32>
    %12 = vector.broadcast %9 : vector<1x128xf32> to vector<8x128xf32>
    %13 = arith.addf %11, %12 : vector<8x128xf32>
    %cst_11 = arith.constant 0.000000e+00 : f32
    %14 = vector.broadcast %cst_11 : f32 to vector<8x128xf32>
    %15 = arith.maximumf %13, %14 : vector<8x128xf32>
    %c0_12 = arith.constant 0 : index
    %c0_13 = arith.constant 0 : index
    %16 = vector.load %arg6[%c0_12, %c0_13] : memref<128x128xbf16, #tpu.memory_space<vmem>>, vector<128x128xbf16>
    %c0_14 = arith.constant 0 : index
    %c0_15 = arith.constant 0 : index
    %17 = vector.load %arg7[%c0_14, %c0_15] : memref<1x128xf32, #tpu.memory_space<vmem>>, vector<1x128xf32>
    %18 = arith.truncf %15 : vector<8x128xf32> to vector<8x128xbf16>
    %cst_16 = arith.constant dense<0.000000e+00> : vector<8x128xf32>
    %19 = tpu.matmul %18, %16, %cst_16 {dimension_numbers = #tpu.dot_dimension_numbers<[1], [0], [0], [1], [0, 0, 1, 1], [], []>} : vector<8x128xbf16>, vector<128x128xbf16>, vector<8x128xf32> -> vector<8x128xf32>
    %20 = vector.broadcast %17 : vector<1x128xf32> to vector<8x128xf32>
    %21 = arith.addf %19, %20 : vector<8x128xf32>
    %22 = vector.extract_strided_slice %21 {offsets = [0, 0], sizes = [8, 1], strides = [1, 1]} : vector<8x128xf32> to vector<8x1xf32>
    %c0_17 = arith.constant 0 : index
    %c0_18 = arith.constant 0 : index
    %23 = vector.load %arg8[%c0_17, %c0_18] : memref<8x1xf32, #tpu.memory_space<vmem>>, vector<8x1xf32>
    tpu.vector_store %arg8[%c0_17, %c0_18], %22 {strides = array<i32>} : memref<8x1xf32, #tpu.memory_space<vmem>>, vector<8x1xf32>,
    return
  }
  func.func @transform_0(%arg0: i32) -> (i32, i32) {
    %c0_i32 = arith.constant 0 : i32
    %c0_i32_0 = arith.constant 0 : i32
    return %arg0, %c0_i32 : i32, i32
  }
  func.func @transform_1(%arg0: i32) -> (i32, i32) {
    %c0_i32 = arith.constant 0 : i32
    %c0_i32_0 = arith.constant 0 : i32
    %c0_i32_1 = arith.constant 0 : i32
    return %c0_i32, %c0_i32_0 : i32, i32
  }
  func.func @transform_2(%arg0: i32) -> (i32, i32) {
    %c0_i32 = arith.constant 0 : i32
    %c0_i32_0 = arith.constant 0 : i32
    %c0_i32_1 = arith.constant 0 : i32
    return %c0_i32, %c0_i32_0 : i32, i32
  }
  func.func @transform_3(%arg0: i32) -> (i32, i32) {
    %c0_i32 = arith.constant 0 : i32
    %c0_i32_0 = arith.constant 0 : i32
    %c0_i32_1 = arith.constant 0 : i32
    return %c0_i32, %c0_i32_0 : i32, i32
  }
  func.func @transform_4(%arg0: i32) -> (i32, i32) {
    %c0_i32 = arith.constant 0 : i32
    %c0_i32_0 = arith.constant 0 : i32
    %c0_i32_1 = arith.constant 0 : i32
    return %c0_i32, %c0_i32_0 : i32, i32
  }
  func.func @transform_5(%arg0: i32) -> (i32, i32) {
    %c0_i32 = arith.constant 0 : i32
    %c0_i32_0 = arith.constant 0 : i32
    %c0_i32_1 = arith.constant 0 : i32
    return %c0_i32, %c0_i32_0 : i32, i32
  }
  func.func @transform_6(%arg0: i32) -> (i32, i32) {
    %c0_i32 = arith.constant 0 : i32
    %c0_i32_0 = arith.constant 0 : i32
    %c0_i32_1 = arith.constant 0 : i32
    return %c0_i32, %c0_i32_0 : i32, i32
  }
  func.func @transform_7(%arg0: i32) -> (i32, i32) {
    %c0_i32 = arith.constant 0 : i32
    %c0_i32_0 = arith.constant 0 : i32
    return %arg0, %c0_i32 : i32, i32
  }
}

</mosaic_0001>

<llo_original>
// kernel: tpu_custom_call.1
$region0: #{tpu_custom_call.1}
  #allocation0 [shape = 'u32[]', space=smem, size = 0x4, offset = 0x4, fixed_abs, tag = 'smem constant byte address 0x4 - core index']
  #allocation1 [shape = 'u32[144,128]{1,0:T(1,128)}', space=vmem, size = 0x12000, scoped, tag = 'internal scratch']
  %s0 = inlined_call_operand.hbm [shape: bf16[8,12], index: 0, kind: input, shape index: {}]
  %s1 = inlined_call_operand.hbm [shape: bf16[12,128], index: 1, kind: input, shape index: {}]
  %s2 = inlined_call_operand.vmem [shape: f32[1,128], index: 2, kind: input, shape index: {}]
  %s3 = inlined_call_operand.hbm [shape: bf16[128,128], index: 3, kind: input, shape index: {}]
  %s4 = inlined_call_operand.vmem [shape: f32[1,128], index: 4, kind: input, shape index: {}]
  %s5 = inlined_call_operand.hbm [shape: bf16[128,128], index: 5, kind: input, shape index: {}]
  %s6 = inlined_call_operand.vmem [shape: f32[1,128], index: 6, kind: input, shape index: {}]
  %s7 = inlined_call_operand.vmem [shape: f32[8,1], index: 7, kind: output, shape index: {}]
  %s8 = sld [smem:[#allocation0]]
  $region54: #{tpu_custom_call.1} parent=0
    _
  %s10 = ssub.s32 1, %s8
  %s11 = scalar_select 0, %s10, %s8
  $region1: #{tpu_custom_call.1} parent=0
    #allocation2 [shape = 'u8[2048]{0}', space=vmem, size = 0x800, scoped, tag = 'input window, operand 0, single buffered']
    #allocation3 [shape = 's32[1]{0}', space=sflag, size = 0x4, scoped, tag = 'scoped memory for tpu_custom_call.1']
    #allocation4 [shape = 'u8[4096]{0}', space=vmem, size = 0x1000, scoped, tag = 'input window, operand 1, single buffered']
    #allocation5 [shape = 's32[1]{0}', space=sflag, size = 0x4, scoped, tag = 'scoped memory for tpu_custom_call.1']
    #allocation6 [shape = 'u8[32768]{0}', space=vmem, size = 0x8000, scoped, tag = 'input window, operand 3, single buffered']
    #allocation7 [shape = 'u8[32768]{0}', space=vmem, size = 0x8000, scoped, tag = 'input window, operand 5, single buffered']
    #allocation8 [shape = 's32[1]{0}', space=sflag, size = 0x4, scoped, tag = 'scoped memory for tpu_custom_call.1']
    %12 = vsyncpa [#allocation3], 0
    %13 = vsyncpa [#allocation5], 0
    %14 = vsyncpa [#allocation8], 0
    // Predicated region
    $region2: #{tpu_custom_call.1} parent=1 // pred_check
      _
    $region3: #{tpu_custom_call.1} parent=1 // pred_check_branch
      %16 = sbr.rel (0) target = $region5
    $region4: #{tpu_custom_call.1} parent=1 // pred_region
      %s18 = ssub.s32 64, 64
      %19 = vsyncadd [#allocation3], %s18
      %s21 = sshll.u32 [#allocation2], 4
      %s22 = int_to_ptr.vmem [resolvable:$true] %s21
      %24 = dma.hbm_to_vmem [thread:$0]  %s0, 64, %s22, [#allocation3]
    $region5: #{tpu_custom_call.1} parent=1 // pred_fallthru
      _
    // Predicated region
    $region6: #{tpu_custom_call.1} parent=1 // pred_check
      _
    $region7: #{tpu_custom_call.1} parent=1 // pred_check_branch
      %26 = sbr.rel (0) target = $region9
    $region8: #{tpu_custom_call.1} parent=1 // pred_region
      %s28 = ssub.s32 128, 128
      %29 = vsyncadd [#allocation5], %s28
      %s30 = sshll.u32 [#allocation4], 4
      %s31 = int_to_ptr.vmem [resolvable:$true] %s30
      %36 = dma.hbm_to_vmem [thread:$0]  %s1, 128, %s31, [#allocation5], 64, 64, 4
    $region9: #{tpu_custom_call.1} parent=1 // pred_fallthru
      _
    // Predicated region
    $region10: #{tpu_custom_call.1} parent=1 // pred_check
      _
    $region11: #{tpu_custom_call.1} parent=1 // pred_check_branch
      %38 = sbr.rel (0) target = $region13
    $region12: #{tpu_custom_call.1} parent=1 // pred_region
      _
    $region13: #{tpu_custom_call.1} parent=1 // pred_fallthru
      _
    // Predicated region
    $region14: #{tpu_custom_call.1} parent=1 // pred_check
      _
    $region15: #{tpu_custom_call.1} parent=1 // pred_check_branch
      %40 = sbr.rel (0) target = $region17
    $region16: #{tpu_custom_call.1} parent=1 // pred_region
      %s42 = ssub.s32 1024, 1024
      %43 = vsyncadd [#allocation5], %s42
      %s44 = sshll.u32 [#allocation6], 4
      %s45 = int_to_ptr.vmem [resolvable:$true] %s44
      %50 = dma.hbm_to_vmem [thread:$0]  %s3, 1024, %s45, [#allocation5], 64, 64, 4
    $region17: #{tpu_custom_call.1} parent=1 // pred_fallthru
      _
    // Predicated region
    $region18: #{tpu_custom_call.1} parent=1 // pred_check
      _
    $region19: #{tpu_custom_call.1} parent=1 // pred_check_branch
      %52 = sbr.rel (0) target = $region21
    $region20: #{tpu_custom_call.1} parent=1 // pred_region
      _
    $region21: #{tpu_custom_call.1} parent=1 // pred_fallthru
      _
    // Predicated region
    $region22: #{tpu_custom_call.1} parent=1 // pred_check
      _
    $region23: #{tpu_custom_call.1} parent=1 // pred_check_branch
      %54 = sbr.rel (0) target = $region25
    $region24: #{tpu_custom_call.1} parent=1 // pred_region
      %s56 = ssub.s32 1024, 1024
      %57 = vsyncadd [#allocation8], %s56
      %s58 = sshll.u32 [#allocation7], 4
      %s59 = int_to_ptr.vmem [resolvable:$true] %s58
      %64 = dma.hbm_to_vmem [thread:$0]  %s5, 1024, %s59, [#allocation8], 64, 64, 4
    $region25: #{tpu_custom_call.1} parent=1 // pred_fallthru
      _
    // Predicated region
    $region26: #{tpu_custom_call.1} parent=1 // pred_check
      _
    $region27: #{tpu_custom_call.1} parent=1 // pred_check_branch
      %66 = sbr.rel (0) target = $region29
    $region28: #{tpu_custom_call.1} parent=1 // pred_region
      _
    $region29: #{tpu_custom_call.1} parent=1 // pred_fallthru
      _
    // Predicated region
    $region30: #{tpu_custom_call.1} parent=1 // pred_check
      _
    $region31: #{tpu_custom_call.1} parent=1 // pred_check_branch
      %68 = sbr.rel (0) target = $region33
    $region32: #{tpu_custom_call.1} parent=1 // pred_region
      %69 = dma.done [#allocation3], 64
    $region33: #{tpu_custom_call.1} parent=1 // pred_fallthru
      _
    // Predicated region
    $region34: #{tpu_custom_call.1} parent=1 // pred_check
      _
    $region35: #{tpu_custom_call.1} parent=1 // pred_check_branch
      %71 = sbr.rel (0) target = $region37
    $region36: #{tpu_custom_call.1} parent=1 // pred_region
      %72 = dma.done [#allocation5], 128
    $region37: #{tpu_custom_call.1} parent=1 // pred_fallthru
      _
    // Predicated region
    $region38: #{tpu_custom_call.1} parent=1 // pred_check
      _
    $region39: #{tpu_custom_call.1} parent=1 // pred_check_branch
      %74 = sbr.rel (0) target = $region41
    $region40: #{tpu_custom_call.1} parent=1 // pred_region
      %75 = dma.done [#allocation5], 1024
    $region41: #{tpu_custom_call.1} parent=1 // pred_fallthru
      _
    // Predicated region
    $region42: #{tpu_custom_call.1} parent=1 // pred_check
      _
    $region43: #{tpu_custom_call.1} parent=1 // pred_check_branch
      %77 = sbr.rel (0) target = $region45
    $region44: #{tpu_custom_call.1} parent=1 // pred_region
      %78 = dma.done [#allocation8], 1024
    $region45: #{tpu_custom_call.1} parent=1 // pred_fallthru
      _
    %v80 = vld [vmem:[#allocation2] sm:$0xf]
    %v81 = vld [vmem:[#allocation4] sm:$0xf]
    %v82 = vld [vmem:[#allocation4 + $0x4] sm:$0x3]
    %v83 = vld [vmem:[%s2] sm:$0x1]
    %v85 = vlaneseq
    %v86 = vshrl.u32 %v85, 7
    %v87 = vsub.s32 0, %v86
    %v88 = vrot.slane %v83, %v87
    %v92 = vunpack.c.l.b16 %v81
    %v93 = vunpack.c.l.b16 %v82
    %v94 = vpack.c.b16 %v93, %v92
    %vm95 = vcmask 97280
    %v97 = vsel %vm95, %v80, 0
    %vm99 = vcmask 1045504
    %v101 = vsel %vm99, %v94, 0
    %103 = vmatprep.subr.bf16.mxu0 0
    %104 = vmatpush1.bf16.msra.mxu0 0
    %105 = vmatprep.subr.bf16.mxu0 0
    %106 = vmatpush1.bf16.msra.mxu0 0
    %107 = vmatprep.subr.bf16.mxu0 0
    %108 = vmatpush1.bf16.msra.mxu0 0
    %109 = vmatprep.subr.bf16.mxu0 0
    %110 = vmatpush1.bf16.msra.mxu0 0
    %111 = vmatprep.subr.bf16.mxu0 0
    %112 = vmatpush1.bf16.msra.mxu0 0
    %113 = vmatprep.subr.bf16.mxu0 0
    %114 = vmatpush1.bf16.msra.mxu0 0
    %115 = vmatprep.subr.bf16.mxu0 0
    %116 = vmatpush1.bf16.msra.mxu0 0
    %117 = vmatprep.subr.bf16.mxu0 0
    %118 = vmatpush1.bf16.msra.mxu0 %v101
    %119 = vmatprep.subr.bf16.mxu0 0
    %120 = vmatpush2.bf16.msra.mxu0 0
    %121 = vmatprep.subr.bf16.mxu0 0
    %122 = vmatpush2.bf16.msra.mxu0 0
    %123 = vmatprep.subr.bf16.mxu0 0
    %124 = vmatpush2.bf16.msra.mxu0 0
    %125 = vmatprep.subr.bf16.mxu0 0
    %126 = vmatpush2.bf16.msra.mxu0 0
    %127 = vmatprep.subr.bf16.mxu0 0
    %128 = vmatpush2.bf16.msra.mxu0 0
    %129 = vmatprep.subr.bf16.mxu0 0
    %130 = vmatpush2.bf16.msra.mxu0 0
    %131 = vmatprep.subr.bf16.mxu0 0
    %132 = vmatpush2.bf16.msra.mxu0 0
    %133 = vmatprep.subr.bf16.mxu0 0
    %134 = vmatpush2.bf16.msra.mxu0 0
    %135 = vmatprep.mubr.bf16.mxu0 0
    %136 = vmatmul.mubr.bf16.gmra.mxu0 %v97
    %v137 = vpop.f32.mrf.mxu0
    %v138 = vadd.f32 %v88, %v137
    %v139 = vpop.f32.mrf.mxu0
    %v140 = vpop.f32.mrf.mxu0
    %v141 = vpop.f32.mrf.mxu0
    %142 = vdwg.mxu0
    %v143 = vmax.f32 %v138, 0.0
    %v144 = vld [vmem:[#allocation6] sm:$0xf]
    %v145 = vld [vmem:[#allocation6 + $0x4] sm:$0xf]
    %v146 = vld [vmem:[#allocation6 + $0x8] sm:$0xf]
    %v147 = vld [vmem:[#allocation6 + $0xc] sm:$0xf]
    %v148 = vld [vmem:[#allocation6 + $0x10] sm:$0xf]
    %v149 = vld [vmem:[#allocation6 + $0x14] sm:$0xf]
    %v150 = vld [vmem:[#allocation6 + $0x18] sm:$0xf]
    %v151 = vld [vmem:[#allocation6 + $0x1c] sm:$0xf]
    %v152 = vld [vmem:[#allocation6 + $0x20] sm:$0xf]
    %v153 = vld [vmem:[#allocation6 + $0x24] sm:$0xf]
    %v154 = vld [vmem:[#allocation6 + $0x28] sm:$0xf]
    %v155 = vld [vmem:[#allocation6 + $0x2c] sm:$0xf]
    %v156 = vld [vmem:[#allocation6 + $0x30] sm:$0xf]
    %v157 = vld [vmem:[#allocation6 + $0x34] sm:$0xf]
    %v158 = vld [vmem:[#allocation6 + $0x38] sm:$0xf]
    %v159 = vld [vmem:[#allocation6 + $0x3c] sm:$0xf]
    %v160 = vld [vmem:[%s4] sm:$0x1]
    %v161 = vpack.c.bf16 %v143, %v143
    %v163 = vlaneseq
    %v164 = vshrl.u32 %v163, 7
    %v165 = vsub.s32 0, %v164
    %v166 = vrot.slane %v160, %v165
    %v184 = vunpack.c.l.b16 %v144
    %v185 = vunpack.c.l.b16 %v145
    %v186 = vunpack.c.l.b16 %v146
    %v187 = vunpack.c.l.b16 %v147
    %v188 = vunpack.c.l.b16 %v148
    %v189 = vunpack.c.l.b16 %v149
    %v190 = vunpack.c.l.b16 %v150
    %v191 = vunpack.c.l.b16 %v151
    %v192 = vunpack.c.l.b16 %v152
    %v193 = vunpack.c.l.b16 %v153
    %v194 = vunpack.c.l.b16 %v154
    %v195 = vunpack.c.l.b16 %v155
    %v196 = vunpack.c.l.b16 %v156
    %v197 = vunpack.c.l.b16 %v157
    %v198 = vunpack.c.l.b16 %v158
    %v199 = vunpack.c.l.b16 %v159
    %v200 = vpack.c.b16 %v185, %v184
    %v201 = vpack.c.b16 %v187, %v186
    %v202 = vpack.c.b16 %v189, %v188
    %v203 = vpack.c.b16 %v191, %v190
    %v204 = vpack.c.b16 %v193, %v192
    %v205 = vpack.c.b16 %v195, %v194
    %v206 = vpack.c.b16 %v197, %v196
    %v207 = vpack.c.b16 %v199, %v198
    %216 = vmatprep.subr.bf16.mxu0 0
    %217 = vmatpush1.bf16.msra.mxu0 %v207
    %218 = vmatprep.subr.bf16.mxu0 0
    %219 = vmatpush1.bf16.msra.mxu0 %v206
    %220 = vmatprep.subr.bf16.mxu0 0
    %221 = vmatpush1.bf16.msra.mxu0 %v205
    %222 = vmatprep.subr.bf16.mxu0 0
    %223 = vmatpush1.bf16.msra.mxu0 %v204
    %224 = vmatprep.subr.bf16.mxu0 0
    %225 = vmatpush1.bf16.msra.mxu0 %v203
    %226 = vmatprep.subr.bf16.mxu0 0
    %227 = vmatpush1.bf16.msra.mxu0 %v202
    %228 = vmatprep.subr.bf16.mxu0 0
    %229 = vmatpush1.bf16.msra.mxu0 %v201
    %230 = vmatprep.subr.bf16.mxu0 0
    %231 = vmatpush1.bf16.msra.mxu0 %v200
    %232 = vmatprep.subr.bf16.mxu0 0
    %233 = vmatpush2.bf16.msra.mxu0 0
    %234 = vmatprep.subr.bf16.mxu0 0
    %235 = vmatpush2.bf16.msra.mxu0 0
    %236 = vmatprep.subr.bf16.mxu0 0
    %237 = vmatpush2.bf16.msra.mxu0 0
    %238 = vmatprep.subr.bf16.mxu0 0
    %239 = vmatpush2.bf16.msra.mxu0 0
    %240 = vmatprep.subr.bf16.mxu0 0
    %241 = vmatpush2.bf16.msra.mxu0 0
    %242 = vmatprep.subr.bf16.mxu0 0
    %243 = vmatpush2.bf16.msra.mxu0 0
    %244 = vmatprep.subr.bf16.mxu0 0
    %245 = vmatpush2.bf16.msra.mxu0 0
    %246 = vmatprep.subr.bf16.mxu0 0
    %247 = vmatpush2.bf16.msra.mxu0 0
    %248 = vmatprep.mubr.bf16.mxu0 0
    %249 = vmatmul.mubr.bf16.gmra.mxu0 %v161
    %v250 = vpop.f32.mrf.mxu0
    %v251 = vadd.f32 %v166, %v250
    %v252 = vpop.f32.mrf.mxu0
    %v253 = vpop.f32.mrf.mxu0
    %v254 = vpop.f32.mrf.mxu0
    %255 = vdwg.mxu0
    %v256 = vmax.f32 %v251, 0.0
    %v257 = vld [vmem:[#allocation7] sm:$0xf]
    %v258 = vld [vmem:[#allocation7 + $0x4] sm:$0xf]
    %v259 = vld [vmem:[#allocation7 + $0x8] sm:$0xf]
    %v260 = vld [vmem:[#allocation7 + $0xc] sm:$0xf]
    %v261 = vld [vmem:[#allocation7 + $0x10] sm:$0xf]
    %v262 = vld [vmem:[#allocation7 + $0x14] sm:$0xf]
    %v263 = vld [vmem:[#allocation7 + $0x18] sm:$0xf]
    %v264 = vld [vmem:[#allocation7 + $0x1c] sm:$0xf]
    %v265 = vld [vmem:[#allocation7 + $0x20] sm:$0xf]
    %v266 = vld [vmem:[#allocation7 + $0x24] sm:$0xf]
    %v267 = vld [vmem:[#allocation7 + $0x28] sm:$0xf]
    %v268 = vld [vmem:[#allocation7 + $0x2c] sm:$0xf]
    %v269 = vld [vmem:[#allocation7 + $0x30] sm:$0xf]
    %v270 = vld [vmem:[#allocation7 + $0x34] sm:$0xf]
    %v271 = vld [vmem:[#allocation7 + $0x38] sm:$0xf]
    %v272 = vld [vmem:[#allocation7 + $0x3c] sm:$0xf]
    %v273 = vld [vmem:[%s6] sm:$0x1]
    %v274 = vpack.c.bf16 %v256, %v256
    %v276 = vlaneseq
    %v277 = vshrl.u32 %v276, 7
    %v278 = vsub.s32 0, %v277
    %v279 = vrot.slane %v273, %v278
    %v297 = vunpack.c.l.b16 %v257
    %v298 = vunpack.c.l.b16 %v258
    %v299 = vunpack.c.l.b16 %v259
    %v300 = vunpack.c.l.b16 %v260
    %v301 = vunpack.c.l.b16 %v261
    %v302 = vunpack.c.l.b16 %v262
    %v303 = vunpack.c.l.b16 %v263
    %v304 = vunpack.c.l.b16 %v264
    %v305 = vunpack.c.l.b16 %v265
    %v306 = vunpack.c.l.b16 %v266
    %v307 = vunpack.c.l.b16 %v267
    %v308 = vunpack.c.l.b16 %v268
    %v309 = vunpack.c.l.b16 %v269
    %v310 = vunpack.c.l.b16 %v270
    %v311 = vunpack.c.l.b16 %v271
    %v312 = vunpack.c.l.b16 %v272
    %v313 = vpack.c.b16 %v298, %v297
    %v314 = vpack.c.b16 %v300, %v299
    %v315 = vpack.c.b16 %v302, %v301
    %v316 = vpack.c.b16 %v304, %v303
    %v317 = vpack.c.b16 %v306, %v305
    %v318 = vpack.c.b16 %v308, %v307
    %v319 = vpack.c.b16 %v310, %v309
    %v320 = vpack.c.b16 %v312, %v311
    %329 = vmatprep.subr.bf16.mxu0 0
    %330 = vmatpush1.bf16.msra.mxu0 %v320
    %331 = vmatprep.subr.bf16.mxu0 0
    %332 = vmatpush1.bf16.msra.mxu0 %v319
    %333 = vmatprep.subr.bf16.mxu0 0
    %334 = vmatpush1.bf16.msra.mxu0 %v318
    %335 = vmatprep.subr.bf16.mxu0 0
    %336 = vmatpush1.bf16.msra.mxu0 %v317
    %337 = vmatprep.subr.bf16.mxu0 0
    %338 = vmatpush1.bf16.msra.mxu0 %v316
    %339 = vmatprep.subr.bf16.mxu0 0
    %340 = vmatpush1.bf16.msra.mxu0 %v315
    %341 = vmatprep.subr.bf16.mxu0 0
    %342 = vmatpush1.bf16.msra.mxu0 %v314
    %343 = vmatprep.subr.bf16.mxu0 0
    %344 = vmatpush1.bf16.msra.mxu0 %v313
    %345 = vmatprep.subr.bf16.mxu0 0
    %346 = vmatpush2.bf16.msra.mxu0 0
    %347 = vmatprep.subr.bf16.mxu0 0
    %348 = vmatpush2.bf16.msra.mxu0 0
    %349 = vmatprep.subr.bf16.mxu0 0
    %350 = vmatpush2.bf16.msra.mxu0 0
    %351 = vmatprep.subr.bf16.mxu0 0
    %352 = vmatpush2.bf16.msra.mxu0 0
    %353 = vmatprep.subr.bf16.mxu0 0
    %354 = vmatpush2.bf16.msra.mxu0 0
    %355 = vmatprep.subr.bf16.mxu0 0
    %356 = vmatpush2.bf16.msra.mxu0 0
    %357 = vmatprep.subr.bf16.mxu0 0
    %358 = vmatpush2.bf16.msra.mxu0 0
    %359 = vmatprep.subr.bf16.mxu0 0
    %360 = vmatpush2.bf16.msra.mxu0 0
    %361 = vmatprep.mubr.bf16.mxu0 0
    %362 = vmatmul.mubr.bf16.gmra.mxu0 %v274
    %v363 = vpop.f32.mrf.mxu0
    %v364 = vadd.f32 %v279, %v363
    %v365 = vpop.f32.mrf.mxu0
    %v366 = vpop.f32.mrf.mxu0
    %v367 = vpop.f32.mrf.mxu0
    %368 = vdwg.mxu0
    %vm369 = vcmask 7168
    %370 = vst.msk [vmem:[%s7] sm:$0xff] %vm369, %v364
    // Predicated region
    $region46: #{tpu_custom_call.1} parent=1 // pred_check
      _
    $region47: #{tpu_custom_call.1} parent=1 // pred_check_branch
      %372 = sbr.rel (0) target = $region49
    $region48: #{tpu_custom_call.1} parent=1 // pred_region
      _
    $region49: #{tpu_custom_call.1} parent=1 // pred_fallthru
      _
    // Predicated region
    $region50: #{tpu_custom_call.1} parent=1 // pred_check
      _
    $region51: #{tpu_custom_call.1} parent=1 // pred_check_branch
      %374 = sbr.rel (0) target = $region53
    $region52: #{tpu_custom_call.1} parent=1 // pred_region
      _
    $region53: #{tpu_custom_call.1} parent=1 // pred_fallthru
      _
    %375 = vsyncpa [#allocation3], 1
    %376 = vsyncpa [#allocation5], 1
    %377 = vsyncpa [#allocation8], 1

</llo_original>
